<compile_context>
chip_gen: v6e
topology: v6e:2x2x1
jax: 0.10.0
libtpu: 0.0.40
codegen_flags: <defaults>
</compile_context>

<pallas_src>
from dataclasses import dataclass
from typing import Optional

import jax
import jax.numpy as jnp
from jax.experimental import pallas as pl
from jax.experimental.pallas import tpu as pltpu


# ----------------------------------------------------------------------------
# PathOutput (JAX version of the torch dataclass)
# ----------------------------------------------------------------------------
@dataclass
class PathOutput:
    time: jnp.ndarray
    positions: jnp.ndarray
    velocities: Optional[jnp.ndarray] = None
    energies: Optional[jnp.ndarray] = None
    energies_decomposed: Optional[jnp.ndarray] = None
    forces: Optional[jnp.ndarray] = None
    forces_decomposed: Optional[jnp.ndarray] = None

    def __len__(self):
        return len(self.positions)


# ----------------------------------------------------------------------------
# Pallas kernel: positions of the linear geometric path
# ----------------------------------------------------------------------------
_SUBLANE_32BIT = 8
_VMEM_CAP_CACHE = None


def _tpu_vmem_capacity_bytes():
    """Per-generation VMEM capacity (64 MiB v7x, 128 MiB v5e/v6e)."""
    global _VMEM_CAP_CACHE
    if _VMEM_CAP_CACHE is None:
        try:
            _VMEM_CAP_CACHE = int(pltpu.get_tpu_info().vmem_capacity_bytes)
        except Exception:
            _VMEM_CAP_CACHE = 64 * 1024 * 1024   # v7x floor; safe everywhere
    return _VMEM_CAP_CACHE


def _round_up(x, m):
    return ((x + m - 1) // m) * m


def _path_kernel(t_ref, p0_ref, disp_ref, pos_ref):
    # t: (TB, 1) block, p0/disp: (1, D) resident constants, pos: (TB, D) block.
    # Compute in f32 (v5e VPU has no bf16 path); cast only on the store.
    t = t_ref[...].astype(jnp.float32)
    p0 = p0_ref[...].astype(jnp.float32)
    disp = disp_ref[...].astype(jnp.float32)
    pos_ref[...] = (p0 + t * disp).astype(pos_ref.dtype)


def linear_path_positions_pallas(time_b1, p0_row, disp_row, out_dtype):
    """time_b1: (B, 1); p0_row, disp_row: (1, D). Returns positions (B, D)."""
    B = time_b1.shape[0]
    D = p0_row.shape[-1]
    out_itemsize = jnp.dtype(out_dtype).itemsize
    t_itemsize = jnp.dtype(time_b1.dtype).itemsize

    # Packed sublane tile of the output dtype: 8 rows (f32), 16 (bf16), 32 (i8/fp8).
    sub = max(_SUBLANE_32BIT, 32 // max(1, out_itemsize))

    # Tile sizing from the per-generation VMEM capacity: keep the double-buffered
    # output (+ time) footprint under ~1/4 of VMEM.
    vmem_cap = _tpu_vmem_capacity_bytes()
    tile_budget = vmem_cap // 4
    bytes_per_row = D * out_itemsize + t_itemsize
    max_tb = max(sub, (tile_budget // (2 * bytes_per_row)) // sub * sub)

    B8 = _round_up(B, sub)
    TB = min(B8, max_tb)
    # Megacore: v7x has 2 TensorCores — keep at least 2 batch tiles when possible.
    if TB >= B8 and B8 > sub:
        TB = _round_up(pl.cdiv(B8, 2), sub)
    grid = (pl.cdiv(B, TB),)

    cost = pl.CostEstimate(
        flops=2 * B * D,
        transcendentals=0,
        bytes_accessed=int(B * D * out_itemsize + B * t_itemsize + 2 * D * 4),
    )

    return pl.pallas_call(
        _path_kernel,
        out_shape=jax.ShapeDtypeStruct((B, D), out_dtype),
        grid=grid,
        in_specs=[
            pl.BlockSpec((TB, 1), lambda i: (i, 0)),              # time tile
            pl.BlockSpec(memory_space=pltpu.MemorySpace.VMEM),    # p0 (resident)
            pl.BlockSpec(memory_space=pltpu.MemorySpace.VMEM),    # disp (resident)
        ],
        out_specs=pl.BlockSpec((TB, D), lambda i: (i, 0)),
        compiler_params=pltpu.CompilerParams(
            dimension_semantics=("parallel",),
            vmem_limit_bytes=int(vmem_cap // 2),
        ),
        cost_estimate=cost,
    )(time_b1, p0_row, disp_row)


# ----------------------------------------------------------------------------
# BasePath (JAX / Pallas)
# ----------------------------------------------------------------------------
class BasePath:
    def __init__(self, initial_position, final_position, fix_positions=None,
                 dtype=jnp.float32, find_ts=True):
        self.neval = 0
        self.find_ts = find_ts
        self.potential = None          # BasePath has no potential until set
        self.dtype = dtype
        self.initial_position = initial_position.astype(dtype)
        self.final_position = final_position.astype(dtype)
        D = self.initial_position.shape[-1]
        if fix_positions is None:
            self.free_mask = jnp.ones((D,), dtype)
        else:
            self.free_mask = (1.0 - fix_positions.astype(jnp.float32)).astype(dtype)
        # Constant, batch-independent displacement (also equals d pos / d t).
        self.disp = ((self.final_position.astype(jnp.float32)
                      - self.initial_position.astype(jnp.float32))
                     * self.free_mask.astype(jnp.float32))
        # Precomputed (1, D) f32 constant rows fed to the kernel (no per-call HLOs).
        self._p0_row = self.initial_position.astype(jnp.float32).reshape(1, D)
        self._disp_row = self.disp.reshape(1, D)
        self.transform = None
        # TODO(synk): wrap_positions / pbc transform not implemented (no pbc here).
        self._inp_reshaped = None
        self._inp_shape = None
        self.t_init = jnp.zeros((1, 1), dtype)
        self.t_final = jnp.ones((1, 1), dtype)
        self.ts_time = None
        self.ts_region = None

    def set_potential(self, potential):
        self.potential = potential

    # ---- reshape plumbing (matches torch _reshape_in / _reshape_out) ----
    def _reshape_in(self, time):
        if time is None:
            time = jnp.linspace(0.0, 1.0, 101, dtype=self.dtype)
        time = jnp.asarray(time, dtype=self.dtype)
        if time.ndim == 3:
            self._inp_reshaped = True
            self._inp_shape = time.shape
            time = time.reshape(time.shape[0] * time.shape[1], time.shape[2])
        elif time.ndim == 2:
            self._inp_reshaped = False
        elif time.ndim == 1:
            self._inp_reshaped = False
            time = time[:, None]
        else:
            raise ValueError(
                f"Input path time must be of dimensions [B, C, T], [B, T], or [B]; "
                f"instead got {time.shape}")
        return time

    def _reshape_out(self, result):
        if self._inp_reshaped is None:
            raise RuntimeError("Must call _reshape_in() before _reshape_out()")
        if self._inp_reshaped and result is not None:
            B, C, _ = self._inp_shape
            return result.reshape(B, C, result.shape[-1])
        return result

    # ---- geometric path (hot path -> Pallas kernel) ----
    def get_positions(self, time):
        return linear_path_positions_pallas(
            time, self._p0_row, self._disp_row, self.dtype)

    def calculate_velocities(self, time):
        # d positions / d t for a linear path is the constant masked displacement;
        # broadcast lazily instead of materializing it inside the kernel.
        B = time.shape[0]
        D = self.disp.shape[-1]
        return jnp.broadcast_to(self.disp.astype(self.dtype)[None, :], (B, D))

    # ---- forward ----
    def forward(self, time=None, return_velocities=False, return_energies=False,
                return_energies_decomposed=False, return_forces=False,
                return_forces_decomposed=False):
        time = self._reshape_in(time)
        self.neval += int(time.size)   # note: will not work under jax.jit tracing
        positions = self.get_positions(time)
        if self.transform is not None:
            positions = self.transform(positions)
        if (return_energies or return_energies_decomposed or return_forces
                or return_forces_decomposed):
            # TODO(synk): energies/forces require a concrete BasePotential set via
            # set_potential; not part of this kernel.
            assert self.potential is not None, \
                "Potential must be set by 'set_potential' before calling 'forward'"
            raise NotImplementedError("Potential evaluation not implemented")
        velocities = self.calculate_velocities(time) if return_velocities else None
        return PathOutput(
            time=self._reshape_out(time),
            positions=self._reshape_out(positions),
            velocities=self._reshape_out(velocities),
            energies=None, energies_decomposed=None,
            forces=None, forces_decomposed=None,
        )

    __call__ = forward


# ----------------------------------------------------------------------------
# main
# ----------------------------------------------------------------------------
if __name__ == "__main__":
    key = jax.random.PRNGKey(0)
    D = 32          # number of path coordinates (e.g. n_atoms * 3)
    B = 16          # number of time samples

    k0, k1 = jax.random.split(key)
    initial_position = jax.random.normal(k0, (D,), jnp.float32)
    final_position = jax.random.normal(k1, (D,), jnp.float32)
    fix_positions = jnp.zeros((D,), jnp.float32).at[:4].set(1.0)  # first 4 fixed

    path = BasePath(initial_position, final_position, fix_positions=fix_positions)

    # time of shape [B] (also exercises the 1-D -> [B,1] reshape path)
    t = jnp.linspace(0.0, 1.0, B, dtype=jnp.float32)
    out = path.forward(t, return_velocities=True)
    jax.block_until_ready(out.positions)
    jax.block_until_ready(out.velocities)

    # reference check in plain JAX
    disp = (final_position - initial_position) * (1.0 - fix_positions)
    ref_pos = initial_position[None, :] + t[:, None] * disp[None, :]
    ref_vel = jnp.broadcast_to(disp[None, :], (B, D))
    assert out.positions.shape == (B, D)
    assert out.velocities.shape == (B, D)
    assert out.positions.dtype == jnp.float32
    assert jnp.allclose(out.positions, ref_pos, atol=1e-6)
    assert jnp.allclose(out.velocities, ref_vel, atol=1e-6)

    # also exercise the [B, C, T] input path (rearrange in / out)
    t3 = t.reshape(2, 8, 1)
    out3 = path.forward(t3, return_velocities=True)
    jax.block_until_ready(out3.positions)
    assert out3.positions.shape == (2, 8, D)
    assert out3.velocities.shape == (2, 8, D)
    assert jnp.allclose(out3.positions.reshape(B, D), ref_pos, atol=1e-6)

    # exercise a multi-tile grid with a partial trailing block (non-multiple batch)
    B2 = 600
    t2 = jnp.linspace(0.0, 1.0, B2, dtype=jnp.float32)
    out2 = path.forward(t2)
    jax.block_until_ready(out2.positions)
    ref_pos2 = initial_position[None, :] + t2[:, None] * disp[None, :]
    assert out2.positions.shape == (B2, D)
    assert jnp.allclose(out2.positions, ref_pos2, atol=1e-6)

    # default time=None -> 101 samples (odd batch, masked partial block)
    out_default = path.forward()
    jax.block_until_ready(out_default.positions)
    assert out_default.positions.shape == (101, D)
    ref_def = initial_position[None, :] + \
        jnp.linspace(0.0, 1.0, 101, dtype=jnp.float32)[:, None] * disp[None, :]
    assert jnp.allclose(out_default.positions, ref_def, atol=1e-6)

    print("KERNEL_OK")
</pallas_src>

<mosaic_0001>
module attributes {stable_mosaic.version = 11 : i64} {
  func.func @_path_kernel(%arg0: i32, %arg1: memref<8x1xf32, #tpu.memory_space<vmem>>, %arg2: memref<1x32xf32, #tpu.memory_space<vmem>>, %arg3: memref<1x32xf32, #tpu.memory_space<vmem>>, %arg4: memref<8x32xf32, #tpu.memory_space<vmem>>) attributes {dimension_semantics = [#tpu.dimension_semantics<parallel>], iteration_bounds = array<i64: 2>, scalar_prefetch = 0 : i64, scratch_operands = 0 : i64, tpu.core_type = #tpu.core_type<tc>, window_params = [{transform_indices = @transform_0, window_bounds = array<i64: 8, 1>}, {pipeline_mode = #tpu.pipeline_mode<synchronous>, transform_indices = @transform_1, window_bounds = array<i64: 1, 32>}, {pipeline_mode = #tpu.pipeline_mode<synchronous>, transform_indices = @transform_2, window_bounds = array<i64: 1, 32>}, {transform_indices = @transform_3, window_bounds = array<i64: 8, 32>}]} {
    %c0 = arith.constant 0 : index
    %c0_0 = arith.constant 0 : index
    %0 = vector.load %arg1[%c0, %c0_0] : memref<8x1xf32, #tpu.memory_space<vmem>>, vector<8x1xf32>
    %c0_1 = arith.constant 0 : index
    %c0_2 = arith.constant 0 : index
    %1 = vector.load %arg2[%c0_1, %c0_2] : memref<1x32xf32, #tpu.memory_space<vmem>>, vector<1x32xf32>
    %c0_3 = arith.constant 0 : index
    %c0_4 = arith.constant 0 : index
    %2 = vector.load %arg3[%c0_3, %c0_4] : memref<1x32xf32, #tpu.memory_space<vmem>>, vector<1x32xf32>
    %3 = vector.broadcast %0 : vector<8x1xf32> to vector<8x32xf32>
    %4 = vector.broadcast %2 : vector<1x32xf32> to vector<8x32xf32>
    %5 = arith.mulf %3, %4 : vector<8x32xf32>
    %6 = vector.broadcast %1 : vector<1x32xf32> to vector<8x32xf32>
    %7 = arith.addf %6, %5 : vector<8x32xf32>
    %c0_5 = arith.constant 0 : index
    %c0_6 = arith.constant 0 : index
    %8 = vector.load %arg4[%c0_5, %c0_6] : memref<8x32xf32, #tpu.memory_space<vmem>>, vector<8x32xf32>
    tpu.vector_store %arg4[%c0_5, %c0_6], %7 {strides = array<i32>} : memref<8x32xf32, #tpu.memory_space<vmem>>, vector<8x32xf32>,
    return
  }
  func.func @transform_0(%arg0: i32) -> (i32, i32) {
    %c0_i32 = arith.constant 0 : i32
    %c0_i32_0 = arith.constant 0 : i32
    return %arg0, %c0_i32 : i32, i32
  }
  func.func @transform_1(%arg0: i32) -> (i32, i32) {
    %c0_i32 = arith.constant 0 : i32
    %c0_i32_0 = arith.constant 0 : i32
    %c0_i32_1 = arith.constant 0 : i32
    return %c0_i32, %c0_i32_0 : i32, i32
  }
  func.func @transform_2(%arg0: i32) -> (i32, i32) {
    %c0_i32 = arith.constant 0 : i32
    %c0_i32_0 = arith.constant 0 : i32
    %c0_i32_1 = arith.constant 0 : i32
    return %c0_i32, %c0_i32_0 : i32, i32
  }
  func.func @transform_3(%arg0: i32) -> (i32, i32) {
    %c0_i32 = arith.constant 0 : i32
    %c0_i32_0 = arith.constant 0 : i32
    return %arg0, %c0_i32 : i32, i32
  }
}

</mosaic_0001>

<llo_original>
// kernel: tpu_custom_call.1
$region0: #{tpu_custom_call.1}
  #allocation0 [shape = 'u32[]', space=smem, size = 0x4, offset = 0x4, fixed_abs, tag = 'smem constant byte address 0x4 - core index']
  #allocation1 [shape = 'u32[144,128]{1,0:T(1,128)}', space=vmem, size = 0x12000, scoped, tag = 'internal scratch']
  %s0 = inlined_call_operand.vmem [shape: f32[16,1], index: 0, kind: input, shape index: {}]
  %s1 = inlined_call_operand.vmem [shape: f32[1,32], index: 1, kind: input, shape index: {}]
  %s2 = inlined_call_operand.vmem [shape: f32[1,32], index: 2, kind: input, shape index: {}]
  %s3 = inlined_call_operand.hbm [shape: f32[16,32], index: 3, kind: output, shape index: {}]
  %s4 = sld [smem:[#allocation0]]
  $region45: #{tpu_custom_call.1} parent=0
    _
  %s6 = ssub.s32 1, %s4
  %s7 = scalar_select 0, %s6, %s4
  $region1: #{tpu_custom_call.1} parent=0
    #allocation2 [shape = 'u8[8192]{0}', space=vmem, size = 0x2000, scoped, tag = 'output window, operand 0']
    #allocation3 [shape = 's32[2]{0}', space=sflag, size = 0x8, scoped, tag = 'scoped memory for tpu_custom_call.1']
    %8 = vsyncpa [#allocation3], 0
    %s9 = scalar_lea.sflag [#allocation3], 1
    %10 = vsyncpa %s9, 0
    loop: start=0, step=1, limit=4
    $region2: #{tpu_custom_call.1} parent=1 // loop_pre_header
      _
    $region3: #{tpu_custom_call.1} parent=1 // loop_header
      %s12 = sphi 0, %s16
      %p13 = scmp.ge.s32.totalorder %s12, 4
      %s22 = sphi 0, %s24
      %s25 = sphi 0, %s22
      %s26 = sphi 0, %s25
      %s42 = sphi 0, %s26
      %s46 = sphi 0, %s46
      %s48 = sphi 0, %s46
      %s49 = sphi 0, %s48
      %s63 = sphi 0, %s49
      %s67 = sphi 0, %s67
      %s69 = sphi 0, %s67
      %s70 = sphi 0, %s69
      %s84 = sphi 0, %s70
      %s90 = sphi 0, %s92
      %s93 = sphi 0, %s90
      %s94 = sphi 0, %s93
      %s110 = sphi 0, %s94
    $region4: #{tpu_custom_call.1} parent=1 // loop_header_branch
      %15 = sbr.rel (%p13) target = $region8
    $region5: #{tpu_custom_call.1} parent=1 // loop_body
      %s17 = ssub.s32 %s12, 1
      %s18 = ssub.s32 %s12, 2
      %s19 = sadd.s32 %s12, 1
      %s20 = ssub.s32 %s12, %s19
      %p21 = scmp.eq.s32.totalorder %s20, 0
      %s23 = sadd.s32 %s22, 1
      %s24 = scalar_select %p21, %s22, %s23
      %p27 = pneg %p21
      %p28 = scmp.eq.s32.totalorder %s12, 1
      %p29 = por %p27, %p28
      %p30 = scmp.ne.s32.totalorder %s22, %s25
      %p31 = scmp.eq.s32.totalorder %s12, 0
      %p32 = por %p30, %p31
      %p33 = scmp.ne.s32.totalorder %s22, %s25
      %p34 = scmp.eq.s32.totalorder %s17, 1
      %p35 = por %p33, %p34
      %p36 = scmp.ne.s32.totalorder %s25, %s26
      %p37 = scmp.eq.s32.totalorder %s17, 0
      %p38 = por %p36, %p37
      %p39 = scmp.ne.s32.totalorder %s25, %s26
      %p40 = scmp.eq.s32.totalorder %s18, 1
      %p41 = por %p39, %p40
      %p43 = scmp.ne.s32.totalorder %s26, %s42
      %p44 = scmp.eq.s32.totalorder %s18, 0
      %p45 = por %p43, %p44
      %s47 = sadd.s32 %s46, 1
      %p50 = scmp.eq.s32.totalorder %s12, 1
      %p51 = scmp.ne.s32.totalorder %s46, %s48
      %p52 = scmp.eq.s32.totalorder %s12, 0
      %p53 = por %p51, %p52
      %p54 = scmp.ne.s32.totalorder %s46, %s48
      %p55 = scmp.eq.s32.totalorder %s17, 1
      %p56 = por %p54, %p55
      %p57 = scmp.ne.s32.totalorder %s48, %s49
      %p58 = scmp.eq.s32.totalorder %s17, 0
      %p59 = por %p57, %p58
      %p60 = scmp.ne.s32.totalorder %s48, %s49
      %p61 = scmp.eq.s32.totalorder %s18, 1
      %p62 = por %p60, %p61
      %p64 = scmp.ne.s32.totalorder %s49, %s63
      %p65 = scmp.eq.s32.totalorder %s18, 0
      %p66 = por %p64, %p65
      %s68 = sadd.s32 %s67, 1
      %p71 = scmp.eq.s32.totalorder %s12, 1
      %p72 = scmp.ne.s32.totalorder %s67, %s69
      %p73 = scmp.eq.s32.totalorder %s12, 0
      %p74 = por %p72, %p73
      %p75 = scmp.ne.s32.totalorder %s67, %s69
      %p76 = scmp.eq.s32.totalorder %s17, 1
      %p77 = por %p75, %p76
      %p78 = scmp.ne.s32.totalorder %s69, %s70
      %p79 = scmp.eq.s32.totalorder %s17, 0
      %p80 = por %p78, %p79
      %p81 = scmp.ne.s32.totalorder %s69, %s70
      %p82 = scmp.eq.s32.totalorder %s18, 1
      %p83 = por %p81, %p82
      %p85 = scmp.ne.s32.totalorder %s70, %s84
      %p86 = scmp.eq.s32.totalorder %s18, 0
      %p87 = por %p85, %p86
      %s88 = ssub.s32 %s12, %s19
      %p89 = scmp.eq.s32.totalorder %s88, 0
      %s91 = sadd.s32 %s90, 1
      %s92 = scalar_select %p89, %s90, %s91
      %p95 = pneg %p89
      %p96 = scmp.eq.s32.totalorder %s12, 1
      %p97 = por %p95, %p96
      %p98 = scmp.ne.s32.totalorder %s90, %s93
      %p99 = scmp.eq.s32.totalorder %s12, 0
      %p100 = por %p98, %p99
      %p101 = scmp.ne.s32.totalorder %s90, %s93
      %p102 = scmp.eq.s32.totalorder %s17, 1
      %p103 = por %p101, %p102
      %p104 = scmp.ne.s32.totalorder %s93, %s94
      %p105 = scmp.eq.s32.totalorder %s17, 0
      %p106 = por %p104, %p105
      %p107 = scmp.ne.s32.totalorder %s93, %s94
      %p108 = scmp.eq.s32.totalorder %s18, 1
      %p109 = por %p107, %p108
      %p111 = scmp.ne.s32.totalorder %s94, %s110
      %p112 = scmp.eq.s32.totalorder %s18, 0
      %p113 = por %p111, %p112
      %p114 = scmp.le.s32.totalorder 1, %s12
      %p115 = scmp.lt.s32.totalorder %s12, 3
      %p116 = pnand %p114, %p115
      %p117 = pneg %p116
      // Predicated region
      $region9: #{tpu_custom_call.1} parent=5 // pred_check
        _
      $region10: #{tpu_custom_call.1} parent=5 // pred_check_branch
        %119 = sbr.rel (%p116) target = $region12
      $region11: #{tpu_custom_call.1} parent=5 // pred_region
        %s120 = ssub.s32 %s12, 1
        // Predicated region
        $region13: #{tpu_custom_call.1} parent=11 // pred_check
          %p121 = pneg %p59
        $region14: #{tpu_custom_call.1} parent=11 // pred_check_branch
          %123 = sbr.rel (%p121) target = $region16
        $region15: #{tpu_custom_call.1} parent=11 // pred_region
          _
        $region16: #{tpu_custom_call.1} parent=11 // pred_fallthru
          _
        // Predicated region
        $region17: #{tpu_custom_call.1} parent=11 // pred_check
          %p124 = pneg %p80
        $region18: #{tpu_custom_call.1} parent=11 // pred_check_branch
          %126 = sbr.rel (%p124) target = $region20
        $region19: #{tpu_custom_call.1} parent=11 // pred_region
          _
        $region20: #{tpu_custom_call.1} parent=11 // pred_fallthru
          _
      $region12: #{tpu_custom_call.1} parent=5 // pred_fallthru
        _
      %p127 = scmp.lt.s32.totalorder %s12, 2
      // Predicated region
      $region21: #{tpu_custom_call.1} parent=5 // pred_check
        %p128 = pneg %p127
      $region22: #{tpu_custom_call.1} parent=5 // pred_check_branch
        %130 = sbr.rel (%p128) target = $region24
      $region23: #{tpu_custom_call.1} parent=5 // pred_region
        // Predicated region
        $region25: #{tpu_custom_call.1} parent=23 // pred_check
          %p131 = pneg %p32
        $region26: #{tpu_custom_call.1} parent=23 // pred_check_branch
          %133 = sbr.rel (%p131) target = $region28
        $region27: #{tpu_custom_call.1} parent=23 // pred_region
          %p134 = scmp.lt.s32.totalorder %s12, 1
          %s135 = scalar_select %p134, %s12, 1
          %s136 = smul.addr %s135, 8
          %s137 = scalar_lea.vmem %s0, %s136
        $region28: #{tpu_custom_call.1} parent=23 // pred_fallthru
          _
      $region24: #{tpu_custom_call.1} parent=5 // pred_fallthru
        _
      %p138 = scmp.le.s32.totalorder 1, %s12
      %p139 = scmp.lt.s32.totalorder %s12, 3
      %p140 = pnand %p138, %p139
      %p141 = pneg %p140
      // Predicated region
      $region29: #{tpu_custom_call.1} parent=5 // pred_check
        _
      $region30: #{tpu_custom_call.1} parent=5 // pred_check_branch
        %143 = sbr.rel (%p140) target = $region32
      $region31: #{tpu_custom_call.1} parent=5 // pred_region
        %s144 = ssub.s32 %s12, 1
        %p145 = scmp.lt.s32.totalorder %s17, 1
        %s146 = scalar_select %p145, %s17, 1
        %s147 = smul.addr %s146, 8
        %s148 = scalar_lea.vmem %s0, %s147
        %p149 = pneg %p38
        %p150 = pneg %p35
        %p151 = pneg %p59
        %p152 = pneg %p56
        %p153 = pneg %p80
        %p154 = pneg %p77
        %p155 = pneg %p106
        %p156 = pneg %p103
        %s157 = sand.u32 %s93, 1
        %s158 = scalar_lea.sflag [#allocation3], %s157
        %s159 = sand.u32 %s93, 1
        %s160 = smul.addr %s159, 8
        %s161 = scalar_lea.vmem [#allocation2], %s160
        %p162 = scmp.lt.s32.totalorder %s17, 1
        %s163 = scalar_select %p162, %s17, 1
        %s164 = smul.addr %s163, 8
        %s165 = scalar_lea.vmem %s0, %s164
        %v166 = vld [vmem:[%s165] sm:$0xff]
        %v167 = vld [vmem:[%s1] sm:$0x1]
        %v168 = vld [vmem:[%s2] sm:$0x1]
        %170 = vset.pattern.permute.xlu0 0
        %171 = vperm.xlu0 %170, %v166
        %v172 = vpop.permute.xlu0 %171
        %v175 = vlaneseq
        %v176 = vshrl.u32 %v175, 7
        %v177 = vsub.s32 0, %v176
        %v178 = vrot.slane %v168, %v177
        %v180 = vmul.f32 %v172, %v178
        %v182 = vlaneseq
        %v183 = vshrl.u32 %v182, 7
        %v184 = vsub.s32 0, %v183
        %v185 = vrot.slane %v167, %v184
        %v187 = vadd.f32 %v185, %v180
        %vm188 = vcmask 261120
        %189 = vst.msk [vmem:[%s161] sm:$0xff] %vm188, %v187
        %s190 = sand.u32 %s93, 1
        %s191 = scalar_lea.sflag [#allocation3], %s190
        %s192 = sand.u32 %s93, 1
        %s193 = smul.addr %s192, 8
        %s194 = scalar_lea.vmem [#allocation2], %s193
        // Predicated region
        $region33: #{tpu_custom_call.1} parent=31 // pred_check
          %p195 = pneg %p103
        $region34: #{tpu_custom_call.1} parent=31 // pred_check_branch
          %197 = sbr.rel (%p195) target = $region36
        $region35: #{tpu_custom_call.1} parent=31 // pred_region
          %s199 = ssub.s32 128, 128
          %200 = vsyncadd %s191, %s199
          %s201 = smul.addr %s17, 128
          %s202 = scalar_lea.hbm %s3, %s201
          %s204 = sshll.u32 %s194, 4
          %s205 = int_to_ptr.vmem [resolvable:$true] %s204
          %207 = dma.vmem_to_hbm [thread:$0]  %s205, 128, %s202, %s191
        $region36: #{tpu_custom_call.1} parent=31 // pred_fallthru
          _
      $region32: #{tpu_custom_call.1} parent=5 // pred_fallthru
        _
      %p208 = scmp.le.s32.totalorder 2, %s12
      // Predicated region
      $region37: #{tpu_custom_call.1} parent=5 // pred_check
        %p209 = pneg %p208
      $region38: #{tpu_custom_call.1} parent=5 // pred_check_branch
        %211 = sbr.rel (%p209) target = $region40
      $region39: #{tpu_custom_call.1} parent=5 // pred_region
        %s212 = ssub.s32 %s12, 2
        // Predicated region
        $region41: #{tpu_custom_call.1} parent=39 // pred_check
          %p213 = pneg %p109
        $region42: #{tpu_custom_call.1} parent=39 // pred_check_branch
          %215 = sbr.rel (%p213) target = $region44
        $region43: #{tpu_custom_call.1} parent=39 // pred_region
          %s216 = sand.u32 %s94, 1
          %s217 = scalar_lea.sflag [#allocation3], %s216
          %s218 = sand.u32 %s94, 1
          %s219 = smul.addr %s218, 8
          %s220 = scalar_lea.vmem [#allocation2], %s219
          %221 = dma.done %s217, 128
        $region44: #{tpu_custom_call.1} parent=39 // pred_fallthru
          _
      $region40: #{tpu_custom_call.1} parent=5 // pred_fallthru
        _
    $region6: #{tpu_custom_call.1} parent=1 // loop_footer
      %s16 = sadd.s32 1, %s12
    $region7: #{tpu_custom_call.1} parent=1 // loop_footer_branch
      %11 = sbr.rel target = $region3
    $region8: #{tpu_custom_call.1} parent=1 // loop_exit
      _
    %222 = vsyncpa [#allocation3], 1
    %s223 = scalar_lea.sflag [#allocation3], 1
    %224 = vsyncpa %s223, 1

</llo_original>
